<compile_context>
chip_gen: v6e
topology: v6e:2x2x1
jax: 0.10.0
libtpu: 0.0.40
codegen_flags: <defaults>
</compile_context>

<pallas_src>
import functools

import jax
import jax.numpy as jnp
from jax.experimental import pallas as pl
from jax.experimental.pallas import tpu as pltpu

BN_EPS = 1e-5


def rvae_kernel(cond_ref, mean_ref, log_var_ref, eps_ref,
                w0b0_ref, lp_ref, w_ref,
                f_ref, cemb_ref, kld_ref, h_ref, *, dim_y):
    """One grid step = one [BN -> ReLU -> Linear(DxD)] layer; layer 0 also does the K=dim_y Linear.

    cond_ref   : (B, dim_y) f32   conditioning input (full block, pinned)
    mean_ref   : (B, D)     f32   encoder mean (stand-in; pinned, read only at last step)
    log_var_ref: (B, D)     f32   encoder log_var (pinned, read only at last step)
    eps_ref    : (B, D)     f32   randn_like noise (pinned, read only at last step)
    w0b0_ref   : (dim_y+1, D) f32 rows [0,dim_y) = first Linear weight (in,out); row dim_y = b0
    lp_ref     : (1, 3, D)  f32   this layer's [gamma, beta, bias_of_next_linear]
    w_ref      : (1, D, D)  bf16  this layer's DxD Linear weight, stored (in, out)
    f_ref      : (B, D)     f32   reparameterized latent (written at last step)
    cemb_ref   : (B, D)     f32   conditional embedding (written at last step)
    kld_ref    : (1, 128)   f32   scalar KLD broadcast over one lane-dense row
    h_ref      : (B, D)     f32   VMEM scratch carrying activations across grid steps
    """
    i = pl.program_id(0)
    B, D = h_ref.shape

    @pl.when(i == 0)
    def _():
        # First Linear has K = dim_y (tiny): VPU broadcast-FMAs, keep the MXU slot free.
        cond = cond_ref[...] + 1e-8                                   # f32 path (bf16 would underflow)
        h0 = jnp.broadcast_to(w0b0_ref[dim_y:dim_y + 1, :], (B, D))   # bias b0
        for j in range(dim_y):
            h0 = h0 + cond[:, j:j + 1] * w0b0_ref[j:j + 1, :]
        h_ref[...] = h0

    gamma = lp_ref[0, 0:1, :]
    beta = lp_ref[0, 1:2, :]
    bias = lp_ref[0, 2:3, :]

    # BatchNorm1d (training-mode batch stats) -> ReLU -> Linear(D->D) on MXU (bf16 in, f32 acc).
    h = h_ref[...]
    mu = jnp.mean(h, axis=0, keepdims=True)
    var = jnp.mean((h - mu) ** 2, axis=0, keepdims=True)              # biased variance (PyTorch BN fwd)
    h = (h - mu) * jax.lax.rsqrt(var + BN_EPS) * gamma + beta
    h = jnp.maximum(h, 0.0)
    h = jnp.dot(h.astype(jnp.bfloat16), w_ref[0],
                preferred_element_type=jnp.float32) + bias
    h_ref[...] = h

    @pl.when(i == pl.num_programs(0) - 1)
    def _():
        cemb = h_ref[...]
        # mean/log_var/eps are only needed here; deferring the reads keeps their live ranges short.
        mean = mean_ref[...]
        log_var = log_var_ref[...]
        eps = eps_ref[...]

        std = jnp.exp(0.5 * log_var)                                  # single EUP exp
        f_ref[...] = mean + eps * std
        cemb_ref[...] = cemb

        kld_per = -0.5 * jnp.sum(
            1.0 + log_var - (mean - cemb) ** 2 - std * std,           # exp(log_var) = std*std
            axis=-1, keepdims=True)                                   # (B, 1)
        kld_ref[...] = jnp.full(kld_ref.shape, jnp.mean(kld_per), dtype=jnp.float32)


def rvae_forward(cond, mean, log_var, eps, params):
    """Returns (f, cemb, loss_kld). cond: (B, dim_y); mean/log_var/eps: (B, D)."""
    B, D = mean.shape
    dim_y = cond.shape[1]
    assert D % 128 == 0, "keep the feature (lane) dim a multiple of 128"

    cond = cond.astype(jnp.float32)
    mean = mean.astype(jnp.float32)
    log_var = log_var.astype(jnp.float32)
    eps = eps.astype(jnp.float32)

    grid_spec = pltpu.PrefetchScalarGridSpec(
        num_scalar_prefetch=0,
        grid=(4,),                                                     # one DxD layer per step
        in_specs=[
            pl.BlockSpec((B, dim_y), lambda i: (0, 0)),                # cond (full block, pinned)
            pl.BlockSpec((B, D), lambda i: (0, 0)),                    # mean
            pl.BlockSpec((B, D), lambda i: (0, 0)),                    # log_var
            pl.BlockSpec((B, D), lambda i: (0, 0)),                    # eps
            pl.BlockSpec((dim_y + 1, D), lambda i: (0, 0)),            # first Linear W + b0
            pl.BlockSpec((1, 3, D), lambda i: (i, 0, 0)),              # per-layer gamma/beta/bias
            pl.BlockSpec((1, D, D), lambda i: (i, 0, 0)),              # per-layer DxD weight (bf16)
        ],
        out_specs=[
            pl.BlockSpec((B, D), lambda i: (0, 0)),                    # f
            pl.BlockSpec((B, D), lambda i: (0, 0)),                    # cemb
            pl.BlockSpec((1, 128), lambda i: (0, 0)),                  # kld (lane-dense scalar row)
        ],
        scratch_shapes=[pltpu.VMEM((B, D), jnp.float32)],              # h carried across layers
    )

    f, cemb, kld_row = pl.pallas_call(
        functools.partial(rvae_kernel, dim_y=dim_y),
        grid_spec=grid_spec,
        out_shape=(
            jax.ShapeDtypeStruct((B, D), jnp.float32),
            jax.ShapeDtypeStruct((B, D), jnp.float32),
            jax.ShapeDtypeStruct((1, 128), jnp.float32),
        ),
        compiler_params=pltpu.CompilerParams(
            dimension_semantics=("arbitrary",),                        # h is a loop carry, not parallel
            vmem_limit_bytes=4 * 1024 * 1024,                          # honest headroom (~0.2 MiB actual)
        ),
    )(cond, mean, log_var, eps, params["w0b0"], params["layer_params"], params["wrest"])

    return f, cemb, kld_row[0, 0]


def init_params(key, dim_y, dim_z):
    """Deterministic synthetic ConditionalEmbedding parameters, packed for the kernel."""
    k1, k2 = jax.random.split(key)
    # Linear weights stored pre-transposed as (in, out) so the kernel does x @ W.
    w1 = jax.random.normal(k1, (dim_y, dim_z), jnp.float32) * 0.1
    wrest = (jax.random.normal(k2, (4, dim_z, dim_z), jnp.float32) * 0.1).astype(jnp.bfloat16)
    b = jnp.zeros((5, dim_z), jnp.float32)                             # biases for the 5 Linear layers
    gamma = jnp.ones((4, dim_z), jnp.float32)                          # BatchNorm1d weight
    beta = jnp.zeros((4, dim_z), jnp.float32)                          # BatchNorm1d bias

    w0b0 = jnp.concatenate([w1, b[0:1]], axis=0)                       # (dim_y+1, D)
    layer_params = jnp.stack([gamma, beta, b[1:5]], axis=1)            # (4, 3, D): gamma_i, beta_i, b_{i+1}
    return {"w0b0": w0b0, "layer_params": layer_params, "wrest": wrest}


def reference_forward(cond, mean, log_var, eps, params):
    """Pure-JAX reference of the fused path (same math / same bf16 matmul rounding)."""
    dim_y = cond.shape[1]
    w0b0 = params["w0b0"]
    w1 = w0b0[:dim_y]
    b0 = w0b0[dim_y]
    lp = params["layer_params"]                                        # (4, 3, D)
    wrest = params["wrest"]                                            # bf16

    h = (cond + 1e-8) @ w1 + b0
    for i in range(4):
        mu = h.mean(0, keepdims=True)
        var = ((h - mu) ** 2).mean(0, keepdims=True)
        h = (h - mu) * jax.lax.rsqrt(var + BN_EPS) * lp[i, 0] + lp[i, 1]
        h = jnp.maximum(h, 0.0)
        h = jnp.dot(h.astype(jnp.bfloat16), wrest[i],
                    preferred_element_type=jnp.float32) + lp[i, 2]
    cemb = h
    std = jnp.exp(0.5 * log_var)
    f = mean + eps * std
    kld = jnp.mean(-0.5 * jnp.sum(
        1.0 + log_var - (mean - cemb) ** 2 - std * std, axis=-1))
    return f, cemb, kld


if __name__ == "__main__":
    B, dim_y, dim_z = 8, 2, 128          # lane-dense latent dim (module default is dim_z=1024)
    image_ch, H, W = 1, 16, 16

    key = jax.random.PRNGKey(0)
    kx, kc, km, kv, ke, kp = jax.random.split(key, 6)

    # x is consumed by the (unavailable) Encoder; kept only to document the input shape.
    x = jax.random.normal(kx, (B, image_ch, H, W), jnp.float32)            # NCHW
    cond = jax.random.normal(kc, (B, dim_y), jnp.float32)
    mean = jax.random.normal(km, (B, dim_z), jnp.float32) * 0.5            # stand-in Encoder mean
    log_var = jax.random.normal(kv, (B, dim_z), jnp.float32) * 0.1         # stand-in Encoder log_var
    eps = jax.random.normal(ke, (B, dim_z), jnp.float32)                   # torch.randn_like(std)

    params = init_params(kp, dim_y, dim_z)

    f, cemb, loss_kld = rvae_forward(cond, mean, log_var, eps, params)
    jax.block_until_ready((f, cemb, loss_kld))

    f_ref, cemb_ref, kld_ref = reference_forward(cond, mean, log_var, eps, params)

    assert f.shape == (B, dim_z) and cemb.shape == (B, dim_z)
    assert bool(jnp.all(jnp.isfinite(f))) and bool(jnp.all(jnp.isfinite(cemb)))
    assert bool(jnp.isfinite(loss_kld))
    assert bool(jnp.allclose(f, f_ref, rtol=1e-4, atol=1e-4)), "f mismatch vs reference"
    assert bool(jnp.allclose(cemb, cemb_ref, rtol=2e-2, atol=2e-2)), "cemb mismatch vs reference"
    assert bool(jnp.allclose(loss_kld, kld_ref, rtol=2e-2, atol=2e-2)), "kld mismatch vs reference"
    print("KERNEL_OK")
</pallas_src>

<mosaic_0001>
module attributes {stable_mosaic.version = 11 : i64} {
  func.func @rvae_kernel(%arg0: i32, %arg1: memref<8x2xf32, #tpu.memory_space<vmem>>, %arg2: memref<8x128xf32, #tpu.memory_space<vmem>>, %arg3: memref<8x128xf32, #tpu.memory_space<vmem>>, %arg4: memref<8x128xf32, #tpu.memory_space<vmem>>, %arg5: memref<3x128xf32, #tpu.memory_space<vmem>>, %arg6: memref<1x3x128xf32, #tpu.memory_space<vmem>>, %arg7: memref<1x128x128xbf16, #tpu.memory_space<vmem>>, %arg8: memref<8x128xf32, #tpu.memory_space<vmem>>, %arg9: memref<8x128xf32, #tpu.memory_space<vmem>>, %arg10: memref<1x128xf32, #tpu.memory_space<vmem>>, %arg11: memref<8x128xf32, #tpu.memory_space<vmem>>) attributes {dimension_semantics = [#tpu.dimension_semantics<arbitrary>], iteration_bounds = array<i64: 4>, scalar_prefetch = 0 : i64, scratch_operands = 1 : i64, tpu.core_type = #tpu.core_type<tc>, window_params = [{pipeline_mode = #tpu.pipeline_mode<synchronous>, transform_indices = @transform_0, window_bounds = array<i64: 8, 2>}, {pipeline_mode = #tpu.pipeline_mode<synchronous>, transform_indices = @transform_1, window_bounds = array<i64: 8, 128>}, {pipeline_mode = #tpu.pipeline_mode<synchronous>, transform_indices = @transform_2, window_bounds = array<i64: 8, 128>}, {pipeline_mode = #tpu.pipeline_mode<synchronous>, transform_indices = @transform_3, window_bounds = array<i64: 8, 128>}, {pipeline_mode = #tpu.pipeline_mode<synchronous>, transform_indices = @transform_4, window_bounds = array<i64: 3, 128>}, {transform_indices = @transform_5, window_bounds = array<i64: 1, 3, 128>}, {transform_indices = @transform_6, window_bounds = array<i64: 1, 128, 128>}, {pipeline_mode = #tpu.pipeline_mode<synchronous>, transform_indices = @transform_7, window_bounds = array<i64: 8, 128>}, {pipeline_mode = #tpu.pipeline_mode<synchronous>, transform_indices = @transform_8, window_bounds = array<i64: 8, 128>}, {pipeline_mode = #tpu.pipeline_mode<synchronous>, transform_indices = @transform_9, window_bounds = array<i64: 1, 128>}]} {
    %c0_i32 = arith.constant 0 : i32
    %0 = arith.cmpi eq, %arg0, %c0_i32 : i32
    %1 = arith.extui %0 : i1 to i32
    %c0_i32_0 = arith.constant 0 : i32
    %2 = arith.cmpi ne, %1, %c0_i32_0 : i32
    scf.if %2 {
      %c0_21 = arith.constant 0 : index
      %c0_22 = arith.constant 0 : index
      %44 = vector.load %arg1[%c0_21, %c0_22] : memref<8x2xf32, #tpu.memory_space<vmem>>, vector<8x2xf32>
      %cst_23 = arith.constant 9.99999993E-9 : f32
      %45 = vector.broadcast %cst_23 : f32 to vector<8x2xf32>
      %46 = arith.addf %44, %45 : vector<8x2xf32>
      %c2_24 = arith.constant 2 : index
      %c0_25 = arith.constant 0 : index
      %47 = vector.load %arg5[%c2_24, %c0_25] : memref<3x128xf32, #tpu.memory_space<vmem>>, vector<1x128xf32>
      %48 = vector.shape_cast %47 : vector<1x128xf32> to vector<1x128xf32>
      %49 = vector.broadcast %48 : vector<1x128xf32> to vector<8x128xf32>
      %50 = vector.extract_strided_slice %46 {offsets = [0, 0], sizes = [8, 1], strides = [1, 1]} : vector<8x2xf32> to vector<8x1xf32>
      %c0_26 = arith.constant 0 : index
      %c0_27 = arith.constant 0 : index
      %51 = vector.load %arg5[%c0_26, %c0_27] : memref<3x128xf32, #tpu.memory_space<vmem>>, vector<1x128xf32>
      %52 = vector.broadcast %50 : vector<8x1xf32> to vector<8x128xf32>
      %53 = vector.broadcast %51 : vector<1x128xf32> to vector<8x128xf32>
      %54 = arith.mulf %52, %53 : vector<8x128xf32>
      %55 = arith.addf %49, %54 : vector<8x128xf32>
      %56 = vector.extract_strided_slice %46 {offsets = [0, 1], sizes = [8, 1], strides = [1, 1]} : vector<8x2xf32> to vector<8x1xf32>
      %c1_28 = arith.constant 1 : index
      %c0_29 = arith.constant 0 : index
      %57 = vector.load %arg5[%c1_28, %c0_29] : memref<3x128xf32, #tpu.memory_space<vmem>>, vector<1x128xf32>
      %58 = vector.broadcast %56 : vector<8x1xf32> to vector<8x128xf32>
      %59 = vector.broadcast %57 : vector<1x128xf32> to vector<8x128xf32>
      %60 = arith.mulf %58, %59 : vector<8x128xf32>
      %61 = arith.addf %55, %60 : vector<8x128xf32>
      %c0_30 = arith.constant 0 : index
      %c0_31 = arith.constant 0 : index
      %62 = vector.load %arg11[%c0_30, %c0_31] : memref<8x128xf32, #tpu.memory_space<vmem>>, vector<8x128xf32>
      tpu.vector_store %arg11[%c0_30, %c0_31], %61 {strides = array<i32>} : memref<8x128xf32, #tpu.memory_space<vmem>>, vector<8x128xf32>,
    } else {
    }
    %c0 = arith.constant 0 : index
    %c0_1 = arith.constant 0 : index
    %c0_2 = arith.constant 0 : index
    %3 = vector.load %arg6[%c0, %c0_1, %c0_2] : memref<1x3x128xf32, #tpu.memory_space<vmem>>, vector<1x1x128xf32>
    %4 = vector.shape_cast %3 : vector<1x1x128xf32> to vector<1x128xf32>
    %c0_3 = arith.constant 0 : index
    %c1 = arith.constant 1 : index
    %c0_4 = arith.constant 0 : index
    %5 = vector.load %arg6[%c0_3, %c1, %c0_4] : memref<1x3x128xf32, #tpu.memory_space<vmem>>, vector<1x1x128xf32>
    %6 = vector.shape_cast %5 : vector<1x1x128xf32> to vector<1x128xf32>
    %c0_5 = arith.constant 0 : index
    %c2 = arith.constant 2 : index
    %c0_6 = arith.constant 0 : index
    %7 = vector.load %arg6[%c0_5, %c2, %c0_6] : memref<1x3x128xf32, #tpu.memory_space<vmem>>, vector<1x1x128xf32>
    %8 = vector.shape_cast %7 : vector<1x1x128xf32> to vector<1x128xf32>
    %c0_7 = arith.constant 0 : index
    %c0_8 = arith.constant 0 : index
    %9 = vector.load %arg11[%c0_7, %c0_8] : memref<8x128xf32, #tpu.memory_space<vmem>>, vector<8x128xf32>
    %cst = arith.constant dense<0.000000e+00> : vector<128xf32>
    %10 = vector.multi_reduction <add>, %9, %cst [0] : vector<8x128xf32> to vector<128xf32>
    %11 = vector.shape_cast %10 : vector<128xf32> to vector<1x128xf32>
    %cst_9 = arith.constant 8.000000e+00 : f32
    %12 = vector.broadcast %cst_9 : f32 to vector<1x128xf32>
    %13 = arith.divf %11, %12 : vector<1x128xf32>
    %14 = vector.broadcast %13 : vector<1x128xf32> to vector<8x128xf32>
    %15 = arith.subf %9, %14 : vector<8x128xf32>
    %16 = arith.mulf %15, %15 : vector<8x128xf32>
    %cst_10 = arith.constant dense<0.000000e+00> : vector<128xf32>
    %17 = vector.multi_reduction <add>, %16, %cst_10 [0] : vector<8x128xf32> to vector<128xf32>
    %18 = vector.shape_cast %17 : vector<128xf32> to vector<1x128xf32>
    %cst_11 = arith.constant 8.000000e+00 : f32
    %19 = vector.broadcast %cst_11 : f32 to vector<1x128xf32>
    %20 = arith.divf %18, %19 : vector<1x128xf32>
    %21 = vector.broadcast %13 : vector<1x128xf32> to vector<8x128xf32>
    %22 = arith.subf %9, %21 : vector<8x128xf32>
    %cst_12 = arith.constant 9.99999974E-6 : f32
    %23 = vector.broadcast %cst_12 : f32 to vector<1x128xf32>
    %24 = arith.addf %20, %23 : vector<1x128xf32>
    %25 = math.rsqrt %24 : vector<1x128xf32>
    %26 = vector.broadcast %25 : vector<1x128xf32> to vector<8x128xf32>
    %27 = arith.mulf %22, %26 : vector<8x128xf32>
    %28 = vector.broadcast %4 : vector<1x128xf32> to vector<8x128xf32>
    %29 = arith.mulf %27, %28 : vector<8x128xf32>
    %30 = vector.broadcast %6 : vector<1x128xf32> to vector<8x128xf32>
    %31 = arith.addf %29, %30 : vector<8x128xf32>
    %cst_13 = arith.constant 0.000000e+00 : f32
    %32 = vector.broadcast %cst_13 : f32 to vector<8x128xf32>
    %33 = arith.maximumf %31, %32 : vector<8x128xf32>
    %34 = arith.truncf %33 : vector<8x128xf32> to vector<8x128xbf16>
    %c0_14 = arith.constant 0 : index
    %c0_15 = arith.constant 0 : index
    %c0_16 = arith.constant 0 : index
    %35 = vector.load %arg7[%c0_14, %c0_15, %c0_16] : memref<1x128x128xbf16, #tpu.memory_space<vmem>>, vector<1x128x128xbf16>
    %36 = vector.shape_cast %35 : vector<1x128x128xbf16> to vector<128x128xbf16>
    %cst_17 = arith.constant dense<0.000000e+00> : vector<8x128xf32>
    %37 = tpu.matmul %34, %36, %cst_17 {dimension_numbers = #tpu.dot_dimension_numbers<[1], [0], [0], [1], [0, 0, 1, 1], [], []>} : vector<8x128xbf16>, vector<128x128xbf16>, vector<8x128xf32> -> vector<8x128xf32>
    %38 = vector.broadcast %8 : vector<1x128xf32> to vector<8x128xf32>
    %39 = arith.addf %37, %38 : vector<8x128xf32>
    %c0_18 = arith.constant 0 : index
    %c0_19 = arith.constant 0 : index
    %40 = vector.load %arg11[%c0_18, %c0_19] : memref<8x128xf32, #tpu.memory_space<vmem>>, vector<8x128xf32>
    tpu.vector_store %arg11[%c0_18, %c0_19], %39 {strides = array<i32>} : memref<8x128xf32, #tpu.memory_space<vmem>>, vector<8x128xf32>,
    %c3_i32 = arith.constant 3 : i32
    %41 = arith.cmpi eq, %arg0, %c3_i32 : i32
    %42 = arith.extui %41 : i1 to i32
    %c0_i32_20 = arith.constant 0 : i32
    %43 = arith.cmpi ne, %42, %c0_i32_20 : i32
    scf.if %43 {
      %c0_21 = arith.constant 0 : index
      %c0_22 = arith.constant 0 : index
      %44 = vector.load %arg11[%c0_21, %c0_22] : memref<8x128xf32, #tpu.memory_space<vmem>>, vector<8x128xf32>
      %c0_23 = arith.constant 0 : index
      %c0_24 = arith.constant 0 : index
      %45 = vector.load %arg2[%c0_23, %c0_24] : memref<8x128xf32, #tpu.memory_space<vmem>>, vector<8x128xf32>
      %c0_25 = arith.constant 0 : index
      %c0_26 = arith.constant 0 : index
      %46 = vector.load %arg3[%c0_25, %c0_26] : memref<8x128xf32, #tpu.memory_space<vmem>>, vector<8x128xf32>
      %c0_27 = arith.constant 0 : index
      %c0_28 = arith.constant 0 : index
      %47 = vector.load %arg4[%c0_27, %c0_28] : memref<8x128xf32, #tpu.memory_space<vmem>>, vector<8x128xf32>
      %cst_29 = arith.constant 5.000000e-01 : f32
      %48 = vector.broadcast %cst_29 : f32 to vector<8x128xf32>
      %49 = arith.mulf %48, %46 : vector<8x128xf32>
      %50 = math.exp %49 : vector<8x128xf32>
      %51 = arith.mulf %47, %50 : vector<8x128xf32>
      %52 = arith.addf %45, %51 : vector<8x128xf32>
      %c0_30 = arith.constant 0 : index
      %c0_31 = arith.constant 0 : index
      %53 = vector.load %arg8[%c0_30, %c0_31] : memref<8x128xf32, #tpu.memory_space<vmem>>, vector<8x128xf32>
      tpu.vector_store %arg8[%c0_30, %c0_31], %52 {strides = array<i32>} : memref<8x128xf32, #tpu.memory_space<vmem>>, vector<8x128xf32>,
      %c0_32 = arith.constant 0 : index
      %c0_33 = arith.constant 0 : index
      %54 = vector.load %arg9[%c0_32, %c0_33] : memref<8x128xf32, #tpu.memory_space<vmem>>, vector<8x128xf32>
      tpu.vector_store %arg9[%c0_32, %c0_33], %44 {strides = array<i32>} : memref<8x128xf32, #tpu.memory_space<vmem>>, vector<8x128xf32>,
      %cst_34 = arith.constant 1.000000e+00 : f32
      %55 = vector.broadcast %cst_34 : f32 to vector<8x128xf32>
      %56 = arith.addf %55, %46 : vector<8x128xf32>
      %57 = arith.subf %45, %44 : vector<8x128xf32>
      %58 = arith.mulf %57, %57 : vector<8x128xf32>
      %59 = arith.subf %56, %58 : vector<8x128xf32>
      %60 = arith.mulf %50, %50 : vector<8x128xf32>
      %61 = arith.subf %59, %60 : vector<8x128xf32>
      %cst_35 = arith.constant dense<0.000000e+00> : vector<8xf32>
      %62 = vector.multi_reduction <add>, %61, %cst_35 [1] : vector<8x128xf32> to vector<8xf32>
      %63 = vector.shape_cast %62 : vector<8xf32> to vector<8x1xf32>
      %cst_36 = arith.constant -5.000000e-01 : f32
      %64 = vector.broadcast %cst_36 : f32 to vector<8x1xf32>
      %65 = arith.mulf %64, %63 : vector<8x1xf32>
      %66 = vector.shape_cast %65 : vector<8x1xf32> to vector<1x8x1xf32>
      %cst_37 = arith.constant dense<0.000000e+00> : vector<1xf32>
      %67 = vector.multi_reduction <add>, %66, %cst_37 [1, 2] : vector<1x8x1xf32> to vector<1xf32>
      %68 = vector.shape_cast %67 : vector<1xf32> to vector<1x1x1xf32>
      %69 = vector.extract %68[0, 0, 0] : f32 from vector<1x1x1xf32>
      %cst_38 = arith.constant 8.000000e+00 : f32
      %70 = arith.divf %69, %cst_38 : f32
      %71 = vector.broadcast %70 : f32 to vector<1x128xf32>
      %c0_39 = arith.constant 0 : index
      %c0_40 = arith.constant 0 : index
      %72 = vector.load %arg10[%c0_39, %c0_40] : memref<1x128xf32, #tpu.memory_space<vmem>>, vector<1x128xf32>
      tpu.vector_store %arg10[%c0_39, %c0_40], %71 {strides = array<i32>} : memref<1x128xf32, #tpu.memory_space<vmem>>, vector<1x128xf32>,
    } else {
    }
    return
  }
  func.func @transform_0(%arg0: i32) -> (i32, i32) {
    %c0_i32 = arith.constant 0 : i32
    %c0_i32_0 = arith.constant 0 : i32
    %c0_i32_1 = arith.constant 0 : i32
    return %c0_i32, %c0_i32_0 : i32, i32
  }
  func.func @transform_1(%arg0: i32) -> (i32, i32) {
    %c0_i32 = arith.constant 0 : i32
    %c0_i32_0 = arith.constant 0 : i32
    %c0_i32_1 = arith.constant 0 : i32
    return %c0_i32, %c0_i32_0 : i32, i32
  }
  func.func @transform_2(%arg0: i32) -> (i32, i32) {
    %c0_i32 = arith.constant 0 : i32
    %c0_i32_0 = arith.constant 0 : i32
    %c0_i32_1 = arith.constant 0 : i32
    return %c0_i32, %c0_i32_0 : i32, i32
  }
  func.func @transform_3(%arg0: i32) -> (i32, i32) {
    %c0_i32 = arith.constant 0 : i32
    %c0_i32_0 = arith.constant 0 : i32
    %c0_i32_1 = arith.constant 0 : i32
    return %c0_i32, %c0_i32_0 : i32, i32
  }
  func.func @transform_4(%arg0: i32) -> (i32, i32) {
    %c0_i32 = arith.constant 0 : i32
    %c0_i32_0 = arith.constant 0 : i32
    %c0_i32_1 = arith.constant 0 : i32
    return %c0_i32, %c0_i32_0 : i32, i32
  }
  func.func @transform_5(%arg0: i32) -> (i32, i32, i32) {
    %c0_i32 = arith.constant 0 : i32
    %c0_i32_0 = arith.constant 0 : i32
    %c0_i32_1 = arith.constant 0 : i32
    return %arg0, %c0_i32, %c0_i32_0 : i32, i32, i32
  }
  func.func @transform_6(%arg0: i32) -> (i32, i32, i32) {
    %c0_i32 = arith.constant 0 : i32
    %c0_i32_0 = arith.constant 0 : i32
    %c0_i32_1 = arith.constant 0 : i32
    return %arg0, %c0_i32, %c0_i32_0 : i32, i32, i32
  }
  func.func @transform_7(%arg0: i32) -> (i32, i32) {
    %c0_i32 = arith.constant 0 : i32
    %c0_i32_0 = arith.constant 0 : i32
    %c0_i32_1 = arith.constant 0 : i32
    return %c0_i32, %c0_i32_0 : i32, i32
  }
  func.func @transform_8(%arg0: i32) -> (i32, i32) {
    %c0_i32 = arith.constant 0 : i32
    %c0_i32_0 = arith.constant 0 : i32
    %c0_i32_1 = arith.constant 0 : i32
    return %c0_i32, %c0_i32_0 : i32, i32
  }
  func.func @transform_9(%arg0: i32) -> (i32, i32) {
    %c0_i32 = arith.constant 0 : i32
    %c0_i32_0 = arith.constant 0 : i32
    %c0_i32_1 = arith.constant 0 : i32
    return %c0_i32, %c0_i32_0 : i32, i32
  }
}

</mosaic_0001>

<llo_original>
// kernel: tpu_custom_call.1
$region0: #{tpu_custom_call.1}
  #allocation0 [shape = 'u32[]', space=smem, size = 0x4, offset = 0x4, fixed_abs, tag = 'smem constant byte address 0x4 - core index']
  #allocation1 [shape = 'u32[144,128]{1,0:T(1,128)}', space=vmem, size = 0x12000, scoped, tag = 'internal scratch']
  #allocation2 [shape = 'f32[8,128]{1,0:T(8,128)}', space=vmem, size = 0x1000, scoped, tag = 'scratch operand']
  %s0 = inlined_call_operand.vmem [shape: f32[8,2], index: 0, kind: input, shape index: {}]
  %s1 = inlined_call_operand.vmem [shape: f32[8,128], index: 1, kind: input, shape index: {}]
  %s2 = inlined_call_operand.vmem [shape: f32[8,128], index: 2, kind: input, shape index: {}]
  %s3 = inlined_call_operand.vmem [shape: f32[8,128], index: 3, kind: input, shape index: {}]
  %s4 = inlined_call_operand.vmem [shape: f32[3,128], index: 4, kind: input, shape index: {}]
  %s5 = inlined_call_operand.vmem [shape: f32[4,3,128], index: 5, kind: input, shape index: {}]
  %s6 = inlined_call_operand.hbm [shape: bf16[4,128,128], index: 6, kind: input, shape index: {}]
  %s7 = inlined_call_operand.hbm [shape: f32[8,128], index: 7, kind: output, shape index: {0}]
  %s8 = inlined_call_operand.hbm [shape: f32[8,128], index: 8, kind: output, shape index: {1}]
  %s9 = inlined_call_operand.hbm [shape: f32[1,128], index: 9, kind: output, shape index: {2}]
  %10 = xla_tuple %s7, %s8, %s9
  %s11 = sld [smem:[#allocation0]]
  $region89: #{tpu_custom_call.1} parent=0
    _
  %s13 = ssub.s32 1, %s11
  %s14 = scalar_select 0, %s13, %s11
  $region1: #{tpu_custom_call.1} parent=0
    #allocation3 [shape = 'u8[65536]{0}', space=vmem, size = 0x10000, scoped, tag = 'input window, operand 6']
    #allocation4 [shape = 's32[2]{0}', space=sflag, size = 0x8, scoped, tag = 'scoped memory for tpu_custom_call.1']
    #allocation5 [shape = 's32[2]{0}', space=sflag, size = 0x8, scoped, tag = 'scoped memory for tpu_custom_call.1']
    #allocation6 [shape = 'u8[4096]{0}', space=vmem, size = 0x1000, scoped, tag = 'output window, operand 0, single buffered']
    #allocation7 [shape = 'u8[4096]{0}', space=vmem, size = 0x1000, scoped, tag = 'output window, operand 1, single buffered']
    #allocation8 [shape = 's32[1]{0}', space=sflag, size = 0x4, scoped, tag = 'scoped memory for tpu_custom_call.1']
    #allocation9 [shape = 'u8[512]{0}', space=vmem, size = 0x400, scoped, tag = 'output window, operand 2, single buffered']
    %15 = vsyncpa [#allocation4], 0
    %s16 = scalar_lea.sflag [#allocation4], 1
    %17 = vsyncpa %s16, 0
    %18 = vsyncpa [#allocation5], 0
    %19 = vsyncpa [#allocation8], 0
    loop: start=0, step=1, limit=6
    $region2: #{tpu_custom_call.1} parent=1 // loop_pre_header
      _
    $region3: #{tpu_custom_call.1} parent=1 // loop_header
      %s21 = sphi 0, %s25
      %p22 = scmp.ge.s32.totalorder %s21, 6
      %s29 = sphi 0, %s29
      %s31 = sphi 0, %s29
      %s32 = sphi 0, %s31
      %s46 = sphi 0, %s32
      %s50 = sphi 0, %s50
      %s52 = sphi 0, %s50
      %s53 = sphi 0, %s52
      %s67 = sphi 0, %s53
      %s71 = sphi 0, %s71
      %s73 = sphi 0, %s71
      %s74 = sphi 0, %s73
      %s88 = sphi 0, %s74
      %s92 = sphi 0, %s92
      %s94 = sphi 0, %s92
      %s95 = sphi 0, %s94
      %s109 = sphi 0, %s95
      %s113 = sphi 0, %s113
      %s115 = sphi 0, %s113
      %s116 = sphi 0, %s115
      %s130 = sphi 0, %s116
      %s136 = sphi 0, %s138
      %s139 = sphi 0, %s136
      %s140 = sphi 0, %s139
      %s156 = sphi 0, %s140
      %s162 = sphi 0, %s164
      %s165 = sphi 0, %s162
      %s166 = sphi 0, %s165
      %s182 = sphi 0, %s166
      %s186 = sphi 0, %s186
      %s188 = sphi 0, %s186
      %s189 = sphi 0, %s188
      %s203 = sphi 0, %s189
      %s207 = sphi 0, %s207
      %s209 = sphi 0, %s207
      %s210 = sphi 0, %s209
      %s224 = sphi 0, %s210
      %s228 = sphi 0, %s228
      %s230 = sphi 0, %s228
      %s231 = sphi 0, %s230
      %s245 = sphi 0, %s231
    $region4: #{tpu_custom_call.1} parent=1 // loop_header_branch
      %24 = sbr.rel (%p22) target = $region8
    $region5: #{tpu_custom_call.1} parent=1 // loop_body
      %s26 = ssub.s32 %s21, 1
      %s27 = ssub.s32 %s21, 2
      %s28 = sadd.s32 %s21, 1
      %s30 = sadd.s32 %s29, 1
      %p33 = scmp.eq.s32.totalorder %s21, 3
      %p34 = scmp.ne.s32.totalorder %s29, %s31
      %p35 = scmp.eq.s32.totalorder %s21, 0
      %p36 = por %p34, %p35
      %p37 = scmp.ne.s32.totalorder %s29, %s31
      %p38 = scmp.eq.s32.totalorder %s26, 3
      %p39 = por %p37, %p38
      %p40 = scmp.ne.s32.totalorder %s31, %s32
      %p41 = scmp.eq.s32.totalorder %s26, 0
      %p42 = por %p40, %p41
      %p43 = scmp.ne.s32.totalorder %s31, %s32
      %p44 = scmp.eq.s32.totalorder %s27, 3
      %p45 = por %p43, %p44
      %p47 = scmp.ne.s32.totalorder %s32, %s46
      %p48 = scmp.eq.s32.totalorder %s27, 0
      %p49 = por %p47, %p48
      %s51 = sadd.s32 %s50, 1
      %p54 = scmp.eq.s32.totalorder %s21, 3
      %p55 = scmp.ne.s32.totalorder %s50, %s52
      %p56 = scmp.eq.s32.totalorder %s21, 0
      %p57 = por %p55, %p56
      %p58 = scmp.ne.s32.totalorder %s50, %s52
      %p59 = scmp.eq.s32.totalorder %s26, 3
      %p60 = por %p58, %p59
      %p61 = scmp.ne.s32.totalorder %s52, %s53
      %p62 = scmp.eq.s32.totalorder %s26, 0
      %p63 = por %p61, %p62
      %p64 = scmp.ne.s32.totalorder %s52, %s53
      %p65 = scmp.eq.s32.totalorder %s27, 3
      %p66 = por %p64, %p65
      %p68 = scmp.ne.s32.totalorder %s53, %s67
      %p69 = scmp.eq.s32.totalorder %s27, 0
      %p70 = por %p68, %p69
      %s72 = sadd.s32 %s71, 1
      %p75 = scmp.eq.s32.totalorder %s21, 3
      %p76 = scmp.ne.s32.totalorder %s71, %s73
      %p77 = scmp.eq.s32.totalorder %s21, 0
      %p78 = por %p76, %p77
      %p79 = scmp.ne.s32.totalorder %s71, %s73
      %p80 = scmp.eq.s32.totalorder %s26, 3
      %p81 = por %p79, %p80
      %p82 = scmp.ne.s32.totalorder %s73, %s74
      %p83 = scmp.eq.s32.totalorder %s26, 0
      %p84 = por %p82, %p83
      %p85 = scmp.ne.s32.totalorder %s73, %s74
      %p86 = scmp.eq.s32.totalorder %s27, 3
      %p87 = por %p85, %p86
      %p89 = scmp.ne.s32.totalorder %s74, %s88
      %p90 = scmp.eq.s32.totalorder %s27, 0
      %p91 = por %p89, %p90
      %s93 = sadd.s32 %s92, 1
      %p96 = scmp.eq.s32.totalorder %s21, 3
      %p97 = scmp.ne.s32.totalorder %s92, %s94
      %p98 = scmp.eq.s32.totalorder %s21, 0
      %p99 = por %p97, %p98
      %p100 = scmp.ne.s32.totalorder %s92, %s94
      %p101 = scmp.eq.s32.totalorder %s26, 3
      %p102 = por %p100, %p101
      %p103 = scmp.ne.s32.totalorder %s94, %s95
      %p104 = scmp.eq.s32.totalorder %s26, 0
      %p105 = por %p103, %p104
      %p106 = scmp.ne.s32.totalorder %s94, %s95
      %p107 = scmp.eq.s32.totalorder %s27, 3
      %p108 = por %p106, %p107
      %p110 = scmp.ne.s32.totalorder %s95, %s109
      %p111 = scmp.eq.s32.totalorder %s27, 0
      %p112 = por %p110, %p111
      %s114 = sadd.s32 %s113, 1
      %p117 = scmp.eq.s32.totalorder %s21, 3
      %p118 = scmp.ne.s32.totalorder %s113, %s115
      %p119 = scmp.eq.s32.totalorder %s21, 0
      %p120 = por %p118, %p119
      %p121 = scmp.ne.s32.totalorder %s113, %s115
      %p122 = scmp.eq.s32.totalorder %s26, 3
      %p123 = por %p121, %p122
      %p124 = scmp.ne.s32.totalorder %s115, %s116
      %p125 = scmp.eq.s32.totalorder %s26, 0
      %p126 = por %p124, %p125
      %p127 = scmp.ne.s32.totalorder %s115, %s116
      %p128 = scmp.eq.s32.totalorder %s27, 3
      %p129 = por %p127, %p128
      %p131 = scmp.ne.s32.totalorder %s116, %s130
      %p132 = scmp.eq.s32.totalorder %s27, 0
      %p133 = por %p131, %p132
      %s134 = ssub.s32 %s21, %s28
      %p135 = scmp.eq.s32.totalorder %s134, 0
      %s137 = sadd.s32 %s136, 1
      %s138 = scalar_select %p135, %s136, %s137
      %p141 = pneg %p135
      %p142 = scmp.eq.s32.totalorder %s21, 3
      %p143 = por %p141, %p142
      %p144 = scmp.ne.s32.totalorder %s136, %s139
      %p145 = scmp.eq.s32.totalorder %s21, 0
      %p146 = por %p144, %p145
      %p147 = scmp.ne.s32.totalorder %s136, %s139
      %p148 = scmp.eq.s32.totalorder %s26, 3
      %p149 = por %p147, %p148
      %p150 = scmp.ne.s32.totalorder %s139, %s140
      %p151 = scmp.eq.s32.totalorder %s26, 0
      %p152 = por %p150, %p151
      %p153 = scmp.ne.s32.totalorder %s139, %s140
      %p154 = scmp.eq.s32.totalorder %s27, 3
      %p155 = por %p153, %p154
      %p157 = scmp.ne.s32.totalorder %s140, %s156
      %p158 = scmp.eq.s32.totalorder %s27, 0
      %p159 = por %p157, %p158
      %s160 = ssub.s32 %s21, %s28
      %p161 = scmp.eq.s32.totalorder %s160, 0
      %s163 = sadd.s32 %s162, 1
      %s164 = scalar_select %p161, %s162, %s163
      %p167 = pneg %p161
      %p168 = scmp.eq.s32.totalorder %s21, 3
      %p169 = por %p167, %p168
      %p170 = scmp.ne.s32.totalorder %s162, %s165
      %p171 = scmp.eq.s32.totalorder %s21, 0
      %p172 = por %p170, %p171
      %p173 = scmp.ne.s32.totalorder %s162, %s165
      %p174 = scmp.eq.s32.totalorder %s26, 3
      %p175 = por %p173, %p174
      %p176 = scmp.ne.s32.totalorder %s165, %s166
      %p177 = scmp.eq.s32.totalorder %s26, 0
      %p178 = por %p176, %p177
      %p179 = scmp.ne.s32.totalorder %s165, %s166
      %p180 = scmp.eq.s32.totalorder %s27, 3
      %p181 = por %p179, %p180
      %p183 = scmp.ne.s32.totalorder %s166, %s182
      %p184 = scmp.eq.s32.totalorder %s27, 0
      %p185 = por %p183, %p184
      %s187 = sadd.s32 %s186, 1
      %p190 = scmp.eq.s32.totalorder %s21, 3
      %p191 = scmp.ne.s32.totalorder %s186, %s188
      %p192 = scmp.eq.s32.totalorder %s21, 0
      %p193 = por %p191, %p192
      %p194 = scmp.ne.s32.totalorder %s186, %s188
      %p195 = scmp.eq.s32.totalorder %s26, 3
      %p196 = por %p194, %p195
      %p197 = scmp.ne.s32.totalorder %s188, %s189
      %p198 = scmp.eq.s32.totalorder %s26, 0
      %p199 = por %p197, %p198
      %p200 = scmp.ne.s32.totalorder %s188, %s189
      %p201 = scmp.eq.s32.totalorder %s27, 3
      %p202 = por %p200, %p201
      %p204 = scmp.ne.s32.totalorder %s189, %s203
      %p205 = scmp.eq.s32.totalorder %s27, 0
      %p206 = por %p204, %p205
      %s208 = sadd.s32 %s207, 1
      %p211 = scmp.eq.s32.totalorder %s21, 3
      %p212 = scmp.ne.s32.totalorder %s207, %s209
      %p213 = scmp.eq.s32.totalorder %s21, 0
      %p214 = por %p212, %p213
      %p215 = scmp.ne.s32.totalorder %s207, %s209
      %p216 = scmp.eq.s32.totalorder %s26, 3
      %p217 = por %p215, %p216
      %p218 = scmp.ne.s32.totalorder %s209, %s210
      %p219 = scmp.eq.s32.totalorder %s26, 0
      %p220 = por %p218, %p219
      %p221 = scmp.ne.s32.totalorder %s209, %s210
      %p222 = scmp.eq.s32.totalorder %s27, 3
      %p223 = por %p221, %p222
      %p225 = scmp.ne.s32.totalorder %s210, %s224
      %p226 = scmp.eq.s32.totalorder %s27, 0
      %p227 = por %p225, %p226
      %s229 = sadd.s32 %s228, 1
      %p232 = scmp.eq.s32.totalorder %s21, 3
      %p233 = scmp.ne.s32.totalorder %s228, %s230
      %p234 = scmp.eq.s32.totalorder %s21, 0
      %p235 = por %p233, %p234
      %p236 = scmp.ne.s32.totalorder %s228, %s230
      %p237 = scmp.eq.s32.totalorder %s26, 3
      %p238 = por %p236, %p237
      %p239 = scmp.ne.s32.totalorder %s230, %s231
      %p240 = scmp.eq.s32.totalorder %s26, 0
      %p241 = por %p239, %p240
      %p242 = scmp.ne.s32.totalorder %s230, %s231
      %p243 = scmp.eq.s32.totalorder %s27, 3
      %p244 = por %p242, %p243
      %p246 = scmp.ne.s32.totalorder %s231, %s245
      %p247 = scmp.eq.s32.totalorder %s27, 0
      %p248 = por %p246, %p247
      %p249 = scmp.le.s32.totalorder 1, %s21
      %p250 = scmp.lt.s32.totalorder %s21, 5
      %p251 = pnand %p249, %p250
      %p252 = pneg %p251
      // Predicated region
      $region9: #{tpu_custom_call.1} parent=5 // pred_check
        _
      $region10: #{tpu_custom_call.1} parent=5 // pred_check_branch
        %254 = sbr.rel (%p251) target = $region12
      $region11: #{tpu_custom_call.1} parent=5 // pred_region
        %s255 = ssub.s32 %s21, 1
        // Predicated region
        $region13: #{tpu_custom_call.1} parent=11 // pred_check
          %p256 = pneg %p42
        $region14: #{tpu_custom_call.1} parent=11 // pred_check_branch
          %258 = sbr.rel (%p256) target = $region16
        $region15: #{tpu_custom_call.1} parent=11 // pred_region
          _
        $region16: #{tpu_custom_call.1} parent=11 // pred_fallthru
          _
        // Predicated region
        $region17: #{tpu_custom_call.1} parent=11 // pred_check
          %p259 = pneg %p63
        $region18: #{tpu_custom_call.1} parent=11 // pred_check_branch
          %261 = sbr.rel (%p259) target = $region20
        $region19: #{tpu_custom_call.1} parent=11 // pred_region
          _
        $region20: #{tpu_custom_call.1} parent=11 // pred_fallthru
          _
        // Predicated region
        $region21: #{tpu_custom_call.1} parent=11 // pred_check
          %p262 = pneg %p84
        $region22: #{tpu_custom_call.1} parent=11 // pred_check_branch
          %264 = sbr.rel (%p262) target = $region24
        $region23: #{tpu_custom_call.1} parent=11 // pred_region
          _
        $region24: #{tpu_custom_call.1} parent=11 // pred_fallthru
          _
        // Predicated region
        $region25: #{tpu_custom_call.1} parent=11 // pred_check
          %p265 = pneg %p105
        $region26: #{tpu_custom_call.1} parent=11 // pred_check_branch
          %267 = sbr.rel (%p265) target = $region28
        $region27: #{tpu_custom_call.1} parent=11 // pred_region
          _
        $region28: #{tpu_custom_call.1} parent=11 // pred_fallthru
          _
        // Predicated region
        $region29: #{tpu_custom_call.1} parent=11 // pred_check
          %p268 = pneg %p126
        $region30: #{tpu_custom_call.1} parent=11 // pred_check_branch
          %270 = sbr.rel (%p268) target = $region32
        $region31: #{tpu_custom_call.1} parent=11 // pred_region
          _
        $region32: #{tpu_custom_call.1} parent=11 // pred_fallthru
          _
      $region12: #{tpu_custom_call.1} parent=5 // pred_fallthru
        _
      %p271 = scmp.lt.s32.totalorder %s21, 4
      // Predicated region
      $region33: #{tpu_custom_call.1} parent=5 // pred_check
        %p272 = pneg %p271
      $region34: #{tpu_custom_call.1} parent=5 // pred_check_branch
        %274 = sbr.rel (%p272) target = $region36
      $region35: #{tpu_custom_call.1} parent=5 // pred_region
        // Predicated region
        $region37: #{tpu_custom_call.1} parent=35 // pred_check
          %p275 = pneg %p146
        $region38: #{tpu_custom_call.1} parent=35 // pred_check_branch
          %277 = sbr.rel (%p275) target = $region40
        $region39: #{tpu_custom_call.1} parent=35 // pred_region
          %p278 = scmp.lt.s32.totalorder %s21, 3
          %s279 = scalar_select %p278, %s21, 3
          %s280 = smul.addr %s279, 4
          %s281 = scalar_lea.vmem %s5, %s280
        $region40: #{tpu_custom_call.1} parent=35 // pred_fallthru
          _
        // Predicated region
        $region41: #{tpu_custom_call.1} parent=35 // pred_check
          %p282 = pneg %p172
        $region42: #{tpu_custom_call.1} parent=35 // pred_check_branch
          %284 = sbr.rel (%p282) target = $region44
        $region43: #{tpu_custom_call.1} parent=35 // pred_region
          %s285 = sand.u32 %s162, 1
          %s286 = scalar_lea.sflag [#allocation4], %s285
          %s287 = sand.u32 %s162, 1
          %s288 = smul.addr %s287, 64
          %s289 = scalar_lea.vmem [#allocation3], %s288
          %s291 = ssub.s32 1024, 1024
          %292 = vsyncadd %s286, %s291
          %s293 = smul.addr %s21, 16
          %s294 = smul.addr %s293, 64
          %s295 = scalar_lea.hbm %s6, %s294
          %s296 = sshll.u32 %s289, 4
          %s297 = int_to_ptr.vmem [resolvable:$true] %s296
          %302 = dma.hbm_to_vmem [thread:$0]  %s295, 1024, %s297, %s286, 64, 64, 4
        $region44: #{tpu_custom_call.1} parent=35 // pred_fallthru
          _
      $region36: #{tpu_custom_call.1} parent=5 // pred_fallthru
        _
      %p303 = scmp.le.s32.totalorder 1, %s21
      %p304 = scmp.lt.s32.totalorder %s21, 5
      %p305 = pnand %p303, %p304
      %p306 = pneg %p305
      // Predicated region
      $region45: #{tpu_custom_call.1} parent=5 // pred_check
        _
      $region46: #{tpu_custom_call.1} parent=5 // pred_check_branch
        %308 = sbr.rel (%p305) target = $region48
      $region47: #{tpu_custom_call.1} parent=5 // pred_region
        %s309 = ssub.s32 %s21, 1
        %s310 = sand.u32 %s165, 1
        %s311 = scalar_lea.sflag [#allocation4], %s310
        %s312 = sand.u32 %s165, 1
        %s313 = smul.addr %s312, 64
        %s314 = scalar_lea.vmem [#allocation3], %s313
        // Predicated region
        $region49: #{tpu_custom_call.1} parent=47 // pred_check
          %p315 = pneg %p178
        $region50: #{tpu_custom_call.1} parent=47 // pred_check_branch
          %317 = sbr.rel (%p315) target = $region52
        $region51: #{tpu_custom_call.1} parent=47 // pred_region
          %318 = dma.done %s311, 1024
        $region52: #{tpu_custom_call.1} parent=47 // pred_fallthru
          _
        %p319 = pneg %p42
        %p320 = pneg %p39
        %p321 = pneg %p63
        %p322 = pneg %p60
        %p323 = pneg %p84
        %p324 = pneg %p81
        %p325 = pneg %p105
        %p326 = pneg %p102
        %p327 = pneg %p126
        %p328 = pneg %p123
        %p329 = scmp.lt.s32.totalorder %s26, 3
        %s330 = scalar_select %p329, %s26, 3
        %s331 = smul.addr %s330, 4
        %s332 = scalar_lea.vmem %s5, %s331
        %p333 = pneg %p152
        %p334 = pneg %p149
        %s335 = sand.u32 %s165, 1
        %s336 = scalar_lea.sflag [#allocation4], %s335
        %s337 = sand.u32 %s165, 1
        %s338 = smul.addr %s337, 64
        %s339 = scalar_lea.vmem [#allocation3], %s338
        %p340 = pneg %p178
        %p341 = pneg %p175
        %p342 = pneg %p199
        %p343 = pneg %p196
        %p344 = pneg %p220
        %p345 = pneg %p217
        %p346 = pneg %p241
        %p347 = pneg %p238
        %p348 = scmp.lt.s32.totalorder %s26, 3
        %s349 = scalar_select %p348, %s26, 3
        %s350 = smul.addr %s349, 4
        %s351 = scalar_lea.vmem %s5, %s350
        %p353 = scmp.eq.s32.totalorder %s26, 0
        // Predicated region
        $region53: #{tpu_custom_call.1} parent=47 // pred_check
          %p354 = pneg %p353
        $region54: #{tpu_custom_call.1} parent=47 // pred_check_branch
          %356 = sbr.rel (%p354) target = $region56
        $region55: #{tpu_custom_call.1} parent=47 // pred_region
          %v357 = vld [vmem:[%s0] sm:$0xff]
          %v358 = vadd.f32 %v357, 1e-08
          %v359 = vld [vmem:[%s4 + $0x2] sm:$0x1]
          %v360 = vlaneseq
          %v361 = vshrl.u32 %v360, 7
          %v362 = vsub.s32 0, %v361
          %v363 = vrot.slane %v359, %v362
          %v364 = vld [vmem:[%s4] sm:$0x1]
          %366 = vset.pattern.permute.xlu0 0
          %367 = vperm.xlu0 %366, %v358
          %v368 = vpop.permute.xlu0 %367
          %v370 = vlaneseq
          %v371 = vshrl.u32 %v370, 7
          %v372 = vsub.s32 0, %v371
          %v373 = vrot.slane %v364, %v372
          %v374 = vmul.f32 %v368, %v373
          %v375 = vadd.f32 %v363, %v374
          %v376 = vld [vmem:[%s4 + $0x1] sm:$0x1]
          %377 = vset.pattern.permute.xlu0 1
          %378 = vperm.xlu0 %377, %v358
          %v379 = vpop.permute.xlu0 %378
          %v381 = vlaneseq
          %v382 = vshrl.u32 %v381, 7
          %v383 = vsub.s32 0, %v382
          %v384 = vrot.slane %v376, %v383
          %v385 = vmul.f32 %v379, %v384
          %v386 = vadd.f32 %v375, %v385
          %387 = vst [vmem:[#allocation2] sm:$0xff] %v386
        $region56: #{tpu_custom_call.1} parent=47 // pred_fallthru
          _
        %v388 = vld [vmem:[%s351] sm:$0x1]
        %v389 = vld [vmem:[%s351 + $0x1] sm:$0x1]
        %v390 = vld [vmem:[%s351 + $0x2] sm:$0x1]
        %v391 = vld [vmem:[#allocation2] sm:$0xff]
        %v392 = vrot.slane %v391, 4
        %v393 = vadd.f32 %v391, %v392
        %v394 = vrot.slane %v393, 2
        %v395 = vadd.f32 %v393, %v394
        %v396 = vrot.slane %v395, 1
        %v397 = vadd.f32 %v395, %v396
        %v398 = vrcp.pop 8.0
        %v399 = vmul.f32 %v397, %v398
        %v400 = vsub.f32 %v391, %v399
        %v401 = vmul.f32 %v400, %v400
        %v402 = vrot.slane %v401, 4
        %v403 = vadd.f32 %v401, %v402
        %v404 = vrot.slane %v403, 2
        %v405 = vadd.f32 %v403, %v404
        %v406 = vrot.slane %v405, 1
        %v407 = vadd.f32 %v405, %v406
        %v408 = vmul.f32 %v407, %v398
        %v409 = vadd.f32 %v408, 1e-05
        %v410 = vrsqrt.pop %v409
        %v411 = vmul.f32 %v400, %v410
        %v412 = vlaneseq
        %v413 = vshrl.u32 %v412, 7
        %v414 = vsub.s32 0, %v413
        %v415 = vrot.slane %v388, %v414
        %v416 = vmul.f32 %v411, %v415
        %v417 = vlaneseq
        %v418 = vshrl.u32 %v417, 7
        %v419 = vsub.s32 0, %v418
        %v420 = vrot.slane %v389, %v419
        %v421 = vadd.f32 %v416, %v420
        %v422 = vmax.f32 %v421, 0.0
        %v423 = vpack.c.bf16 %v422, %v422
        %v424 = vld [vmem:[%s314] sm:$0xf]
        %v425 = vld [vmem:[%s314 + $0x4] sm:$0xf]
        %v426 = vld [vmem:[%s314 + $0x8] sm:$0xf]
        %v427 = vld [vmem:[%s314 + $0xc] sm:$0xf]
        %v428 = vld [vmem:[%s314 + $0x10] sm:$0xf]
        %v429 = vld [vmem:[%s314 + $0x14] sm:$0xf]
        %v430 = vld [vmem:[%s314 + $0x18] sm:$0xf]
        %v431 = vld [vmem:[%s314 + $0x1c] sm:$0xf]
        %v432 = vld [vmem:[%s314 + $0x20] sm:$0xf]
        %v433 = vld [vmem:[%s314 + $0x24] sm:$0xf]
        %v434 = vld [vmem:[%s314 + $0x28] sm:$0xf]
        %v435 = vld [vmem:[%s314 + $0x2c] sm:$0xf]
        %v436 = vld [vmem:[%s314 + $0x30] sm:$0xf]
        %v437 = vld [vmem:[%s314 + $0x34] sm:$0xf]
        %v438 = vld [vmem:[%s314 + $0x38] sm:$0xf]
        %v439 = vld [vmem:[%s314 + $0x3c] sm:$0xf]
        %v440 = vlaneseq
        %v441 = vshrl.u32 %v440, 7
        %v442 = vsub.s32 0, %v441
        %v443 = vrot.slane %v390, %v442
        %v460 = vunpack.c.l.b16 %v424
        %v461 = vunpack.c.l.b16 %v425
        %v462 = vunpack.c.l.b16 %v426
        %v463 = vunpack.c.l.b16 %v427
        %v464 = vunpack.c.l.b16 %v428
        %v465 = vunpack.c.l.b16 %v429
        %v466 = vunpack.c.l.b16 %v430
        %v467 = vunpack.c.l.b16 %v431
        %v468 = vunpack.c.l.b16 %v432
        %v469 = vunpack.c.l.b16 %v433
        %v470 = vunpack.c.l.b16 %v434
        %v471 = vunpack.c.l.b16 %v435
        %v472 = vunpack.c.l.b16 %v436
        %v473 = vunpack.c.l.b16 %v437
        %v474 = vunpack.c.l.b16 %v438
        %v475 = vunpack.c.l.b16 %v439
        %v476 = vpack.c.b16 %v461, %v460
        %v477 = vpack.c.b16 %v463, %v462
        %v478 = vpack.c.b16 %v465, %v464
        %v479 = vpack.c.b16 %v467, %v466
        %v480 = vpack.c.b16 %v469, %v468
        %v481 = vpack.c.b16 %v471, %v470
        %v482 = vpack.c.b16 %v473, %v472
        %v483 = vpack.c.b16 %v475, %v474
        %492 = vmatprep.subr.bf16.mxu0 0
        %493 = vmatpush1.bf16.msra.mxu0 %v483
        %494 = vmatprep.subr.bf16.mxu0 0
        %495 = vmatpush1.bf16.msra.mxu0 %v482
        %496 = vmatprep.subr.bf16.mxu0 0
        %497 = vmatpush1.bf16.msra.mxu0 %v481
        %498 = vmatprep.subr.bf16.mxu0 0
        %499 = vmatpush1.bf16.msra.mxu0 %v480
        %500 = vmatprep.subr.bf16.mxu0 0
        %501 = vmatpush1.bf16.msra.mxu0 %v479
        %502 = vmatprep.subr.bf16.mxu0 0
        %503 = vmatpush1.bf16.msra.mxu0 %v478
        %504 = vmatprep.subr.bf16.mxu0 0
        %505 = vmatpush1.bf16.msra.mxu0 %v477
        %506 = vmatprep.subr.bf16.mxu0 0
        %507 = vmatpush1.bf16.msra.mxu0 %v476
        %508 = vmatprep.subr.bf16.mxu0 0
        %509 = vmatpush2.bf16.msra.mxu0 0
        %510 = vmatprep.subr.bf16.mxu0 0
        %511 = vmatpush2.bf16.msra.mxu0 0
        %512 = vmatprep.subr.bf16.mxu0 0
        %513 = vmatpush2.bf16.msra.mxu0 0
        %514 = vmatprep.subr.bf16.mxu0 0
        %515 = vmatpush2.bf16.msra.mxu0 0
        %516 = vmatprep.subr.bf16.mxu0 0
        %517 = vmatpush2.bf16.msra.mxu0 0
        %518 = vmatprep.subr.bf16.mxu0 0
        %519 = vmatpush2.bf16.msra.mxu0 0
        %520 = vmatprep.subr.bf16.mxu0 0
        %521 = vmatpush2.bf16.msra.mxu0 0
        %522 = vmatprep.subr.bf16.mxu0 0
        %523 = vmatpush2.bf16.msra.mxu0 0
        %524 = vmatprep.mubr.bf16.mxu0 0
        %525 = vmatmul.mubr.bf16.gmra.mxu0 %v423
        %v526 = vpop.f32.mrf.mxu0
        %v527 = vadd.f32 %v443, %v526
        %v528 = vpop.f32.mrf.mxu0
        %v529 = vpop.f32.mrf.mxu0
        %v530 = vpop.f32.mrf.mxu0
        %531 = vdwg.mxu0
        %532 = vst [vmem:[#allocation2] sm:$0xff] %v527
        %p533 = scmp.eq.s32.totalorder %s26, 3
        // Predicated region
        $region57: #{tpu_custom_call.1} parent=47 // pred_check
          %p534 = pneg %p533
        $region58: #{tpu_custom_call.1} parent=47 // pred_check_branch
          %536 = sbr.rel (%p534) target = $region60
        $region59: #{tpu_custom_call.1} parent=47 // pred_region
          %v537 = vld [vmem:[#allocation2] sm:$0xff]
          %v538 = vld [vmem:[%s1] sm:$0xff]
          %v539 = vld [vmem:[%s2] sm:$0xff]
          %v540 = vld [vmem:[%s3] sm:$0xff]
          %v541 = vmul.f32 %v539, 0.5
          %v542 = vmul.f32 %v541, 1.442695
          %v543 = vpow.pop %v542
          %v544 = vmul.f32 %v540, %v543
          %v545 = vadd.f32 %v538, %v544
          %546 = vst [vmem:[#allocation6] sm:$0xff] %v545
          %547 = vst [vmem:[#allocation7] sm:$0xff] %v537
          %v548 = vadd.f32 %v539, 1.0
          %v549 = vsub.f32 %v538, %v537
          %v550 = vmul.f32 %v549, %v549
          %v551 = vsub.f32 %v548, %v550
          %v552 = vmul.f32 %v543, %v543
          %v553 = vsub.f32 %v551, %v552
          %554 = vadd.xlane.f32.xlu0 %v553
          %v555 = vpop.xlane.xlu0 %554
          %v556 = vmul.f32 %v555, -0.5
          %vm557 = vcmask 7168
          %v558 = vsel %vm557, %v556, 0.0
          %559 = vadd.xlane.f32.xlu0 %v558
          %v560 = vpop.xlane.xlu0 %559
          %v561 = vrot.slane %v560, 4
          %v562 = vadd.f32 %v560, %v561
          %v563 = vrot.slane %v562, 2
          %v564 = vadd.f32 %v562, %v563
          %v565 = vrot.slane %v564, 1
          %v566 = vadd.f32 %v564, %v565
          %s567 = vtos %v566
          %v568 = vrcp.pop 8.0
          %s569 = vtos %v568
          %s570 = smul.f32 %s567, %s569
          %v571 = vstv %s570
          %572 = vst [vmem:[#allocation9] sm:$0x1] %v571
        $region60: #{tpu_custom_call.1} parent=47 // pred_fallthru
          _
        // Predicated region
        $region61: #{tpu_custom_call.1} parent=47 // pred_check
          %p573 = pneg %p196
        $region62: #{tpu_custom_call.1} parent=47 // pred_check_branch
          %575 = sbr.rel (%p573) target = $region64
        $region63: #{tpu_custom_call.1} parent=47 // pred_region
          %s577 = ssub.s32 128, 128
          %578 = vsyncadd [#allocation5], %s577
          %s580 = sshll.u32 [#allocation6], 4
          %s581 = int_to_ptr.vmem [resolvable:$true] %s580
          %583 = dma.vmem_to_hbm [thread:$0]  %s581, 128, %s7, [#allocation5]
        $region64: #{tpu_custom_call.1} parent=47 // pred_fallthru
          _
        // Predicated region
        $region65: #{tpu_custom_call.1} parent=47 // pred_check
          %p584 = pneg %p217
        $region66: #{tpu_custom_call.1} parent=47 // pred_check_branch
          %586 = sbr.rel (%p584) target = $region68
        $region67: #{tpu_custom_call.1} parent=47 // pred_region
          %s588 = ssub.s32 128, 128
          %589 = vsyncadd [#allocation8], %s588
          %s591 = sshll.u32 [#allocation7], 4
          %s592 = int_to_ptr.vmem [resolvable:$true] %s591
          %594 = dma.vmem_to_hbm [thread:$0]  %s592, 128, %s8, [#allocation8]
        $region68: #{tpu_custom_call.1} parent=47 // pred_fallthru
          _
        // Predicated region
        $region69: #{tpu_custom_call.1} parent=47 // pred_check
          %p595 = pneg %p238
        $region70: #{tpu_custom_call.1} parent=47 // pred_check_branch
          %597 = sbr.rel (%p595) target = $region72
        $region71: #{tpu_custom_call.1} parent=47 // pred_region
          %s599 = ssub.s32 16, 16
          %600 = vsyncadd [#allocation8], %s599
          %s602 = sshll.u32 [#allocation9], 4
          %s603 = int_to_ptr.vmem [resolvable:$true] %s602
          %605 = dma.vmem_to_hbm [thread:$0]  %s603, 16, %s9, [#allocation8]
        $region72: #{tpu_custom_call.1} parent=47 // pred_fallthru
          _
        // Predicated region
        $region73: #{tpu_custom_call.1} parent=47 // pred_check
          %p606 = pneg %p196
        $region74: #{tpu_custom_call.1} parent=47 // pred_check_branch
          %608 = sbr.rel (%p606) target = $region76
        $region75: #{tpu_custom_call.1} parent=47 // pred_region
          %609 = dma.done [#allocation5], 128
        $region76: #{tpu_custom_call.1} parent=47 // pred_fallthru
          _
        // Predicated region
        $region77: #{tpu_custom_call.1} parent=47 // pred_check
          %p610 = pneg %p217
        $region78: #{tpu_custom_call.1} parent=47 // pred_check_branch
          %612 = sbr.rel (%p610) target = $region80
        $region79: #{tpu_custom_call.1} parent=47 // pred_region
          %613 = dma.done [#allocation8], 128
        $region80: #{tpu_custom_call.1} parent=47 // pred_fallthru
          _
        // Predicated region
        $region81: #{tpu_custom_call.1} parent=47 // pred_check
          %p614 = pneg %p238
        $region82: #{tpu_custom_call.1} parent=47 // pred_check_branch
          %616 = sbr.rel (%p614) target = $region84
        $region83: #{tpu_custom_call.1} parent=47 // pred_region
          %617 = dma.done [#allocation8], 16
        $region84: #{tpu_custom_call.1} parent=47 // pred_fallthru
          _
      $region48: #{tpu_custom_call.1} parent=5 // pred_fallthru
        _
      %p618 = scmp.le.s32.totalorder 2, %s21
      // Predicated region
      $region85: #{tpu_custom_call.1} parent=5 // pred_check
        %p619 = pneg %p618
      $region86: #{tpu_custom_call.1} parent=5 // pred_check_branch
        %621 = sbr.rel (%p619) target = $region88
      $region87: #{tpu_custom_call.1} parent=5 // pred_region
        %s622 = ssub.s32 %s21, 2
      $region88: #{tpu_custom_call.1} parent=5 // pred_fallthru
        _
    $region6: #{tpu_custom_call.1} parent=1 // loop_footer
      %s25 = sadd.s32 1, %s21
    $region7: #{tpu_custom_call.1} parent=1 // loop_footer_branch
      %20 = sbr.rel target = $region3
    $region8: #{tpu_custom_call.1} parent=1 // loop_exit
      _
    %623 = vsyncpa [#allocation4], 1
    %s624 = scalar_lea.sflag [#allocation4], 1
    %625 = vsyncpa %s624, 1
    %626 = vsyncpa [#allocation5], 1
    %s627 = scalar_lea.sflag [#allocation5], 1
    %628 = vsyncpa %s627, 1
    %629 = vsyncpa [#allocation8], 1

</llo_original>
